<compile_context>
chip_gen: v7x
topology: tpu7x:2x2x1
jax: 0.10.0
libtpu: 0.0.40
codegen_flags: <defaults>
</compile_context>

<pallas_src>
import jax
import jax.numpy as jnp
from jax.experimental import pallas as pl
from jax.experimental.pallas import tpu as pltpu

HIDDEN_DIM = 5   # fixed in the PyTorch module
HP = 8           # padded per-gate width (lane-aligned)


def _lstm_net_kernel(x_ref, w_ih_ref, w_hh_ref, b_ref, w_out_ref, b_out_ref,
                     h0_ref, c0_ref, out_ref):
    """x_ref: (T*B, N) time-major.  out_ref: (T*B, A) time-major."""
    TB = x_ref.shape[0]
    B, Hp = h0_ref.shape
    T = TB // B
    H = HIDDEN_DIM

    w_hh = w_hh_ref[...]                       # (Hp, 4*Hp); rows >= H are zero

    # ---- hoisted input projection: ONE matmul for all (t, b) ---------------
    gx = (jnp.dot(x_ref[...], w_ih_ref[...],
                  preferred_element_type=jnp.float32)
          + b_ref[...])                        # (T*B, 4*Hp)

    # ---- loop-invariant broadcasts hoisted out of the recurrence -----------
    # (JAX does not CSE broadcast_in_dim; materialize the H row-broadcasts once.)
    w_rows = [jnp.broadcast_to(w_hh[k:k + 1, :], (B, 4 * Hp)) for k in range(H)]

    # ---- sequential recurrence: all state stays in vregs --------------------
    h = h0_ref[...]                            # (B, Hp)
    c = c0_ref[...]                            # (B, Hp)
    hs = []
    for t in range(T):                         # static unroll; T is tiny
        gates = gx[t * B:(t + 1) * B, :]       # (B, 4*Hp), static contiguous slice

        # recurrent projection h @ W_hh as VPU broadcast-FMAs (keeps MXU
        # result-FIFO latency off the serial chain on v5e/v6e; on v7x the MRB
        # makes jnp.dot(h, w_hh) competitive — re-benchmark there if needed).
        terms = [gates] + [h[:, k:k + 1] * w_rows[k] for k in range(H)]
        while len(terms) > 1:                  # tree-reduce, depth 3 for 6 terms
            nxt = [terms[i] + terms[i + 1] for i in range(0, len(terms) - 1, 2)]
            if len(terms) % 2:
                nxt.append(terms[-1])
            terms = nxt
        gates = terms[0]                       # (B, 4*Hp)

        # full-width activations: 2 EUP tanh pushes per step.
        # sigmoid(x) == 0.5*(tanh(0.5*x)+1)
        sig_all = 0.5 * (jnp.tanh(0.5 * gates) + 1.0)
        tanh_all = jnp.tanh(gates)

        i_g = sig_all[:, 0 * Hp:1 * Hp]
        f_g = sig_all[:, 1 * Hp:2 * Hp]
        g_g = tanh_all[:, 2 * Hp:3 * Hp]
        o_g = sig_all[:, 3 * Hp:4 * Hp]

        c = f_g * c + i_g * g_g                # padded columns stay exactly 0
        h = o_g * jnp.tanh(c)
        hs.append(h)

    # ---- batched output head + single store ---------------------------------
    hs_all = jnp.concatenate(hs, axis=0)       # (T*B, Hp), one concat post-loop
    out_all = (jnp.dot(hs_all, w_out_ref[...],
                       preferred_element_type=jnp.float32)
               + b_out_ref[...])               # (T*B, A)
    out_ref[...] = out_all.astype(out_ref.dtype)


def lstm_net_forward(x, kparams, hidden0=None):
    """x: (B, T, N_STATES) float32, batch_first like PyTorch. Returns (B, T, N_ACTIONS)."""
    B, T, _ = x.shape
    Hp = kparams["w_hh"].shape[0]
    A = kparams["w_out"].shape[1]

    if hidden0 is None:
        h0 = jnp.zeros((B, Hp), jnp.float32)
        c0 = jnp.zeros((B, Hp), jnp.float32)
    else:
        h0_in, c0_in = hidden0
        h0 = jnp.zeros((B, Hp), jnp.float32).at[:, :HIDDEN_DIM].set(
            jnp.asarray(h0_in, jnp.float32).reshape(B, HIDDEN_DIM))
        c0 = jnp.zeros((B, Hp), jnp.float32).at[:, :HIDDEN_DIM].set(
            jnp.asarray(c0_in, jnp.float32).reshape(B, HIDDEN_DIM))

    # time-major flatten so each recurrence step is one contiguous (B, 4Hp) slice
    x_tm = jnp.transpose(x.astype(jnp.float32), (1, 0, 2)).reshape(T * B, -1)

    vmem = pl.BlockSpec(memory_space=pltpu.MemorySpace.VMEM)
    out_flat = pl.pallas_call(
        _lstm_net_kernel,
        out_shape=jax.ShapeDtypeStruct((T * B, A), jnp.float32),
        in_specs=[vmem] * 8,
        out_specs=vmem,
    )(x_tm, kparams["w_ih"], kparams["w_hh"], kparams["b"],
      kparams["w_out"], kparams["b_out"], h0, c0)

    return jnp.transpose(out_flat.reshape(T, B, A), (1, 0, 2))


def _pad_gate_cols(w, H, Hp):
    """w: (rows, 4H) gate order i|f|g|o -> (rows, 4Hp), each gate zero-padded to Hp."""
    parts = []
    for g in range(4):
        blk = w[:, g * H:(g + 1) * H]
        parts.append(jnp.pad(blk, ((0, 0), (0, Hp - H))))
    return jnp.concatenate(parts, axis=1)


def prepare_kernel_params(w_ih_pt, w_hh_pt, b_ih, b_hh, w_out_pt, b_out):
    """Convert PyTorch-shaped LSTM/Linear params to the padded kernel layout."""
    H, Hp = HIDDEN_DIM, HP
    A = w_out_pt.shape[0]
    w_ih = _pad_gate_cols(w_ih_pt.T, H, Hp)                            # (N, 4Hp)
    w_hh = jnp.zeros((Hp, 4 * Hp), jnp.float32).at[:H, :].set(
        _pad_gate_cols(w_hh_pt.T, H, Hp))                              # (Hp, 4Hp)
    b = _pad_gate_cols((b_ih + b_hh).reshape(1, 4 * H), H, Hp)         # (1, 4Hp)
    w_out = jnp.zeros((Hp, A), jnp.float32).at[:H, :].set(w_out_pt.T)  # (Hp, A)
    return dict(w_ih=w_ih, w_hh=w_hh, b=b, w_out=w_out,
                b_out=b_out.reshape(1, A))


def lstm_net_reference(x, w_ih_pt, w_hh_pt, b_ih, b_hh, w_out_pt, b_out):
    """Pure-JAX reference matching PyTorch nn.LSTM(batch_first=True) + nn.Linear."""
    B, T, _ = x.shape
    H = HIDDEN_DIM
    w_ih, w_hh, bvec = w_ih_pt.T, w_hh_pt.T, b_ih + b_hh

    def step(carry, x_t):
        h, c = carry
        g = x_t @ w_ih + h @ w_hh + bvec
        i = jax.nn.sigmoid(g[:, :H])
        f = jax.nn.sigmoid(g[:, H:2 * H])
        gg = jnp.tanh(g[:, 2 * H:3 * H])
        o = jax.nn.sigmoid(g[:, 3 * H:])
        c_new = f * c + i * gg
        h_new = o * jnp.tanh(c_new)
        return (h_new, c_new), h_new

    h0 = jnp.zeros((B, H), jnp.float32)
    c0 = jnp.zeros((B, H), jnp.float32)
    _, hs = jax.lax.scan(step, (h0, c0), jnp.transpose(x, (1, 0, 2)))
    hs = jnp.transpose(hs, (1, 0, 2))                                  # (B, T, H)
    return hs @ w_out_pt.T + b_out


if __name__ == "__main__":
    B, T, N_STATES, N_ACTIONS = 2, 8, 16, 4
    H = HIDDEN_DIM

    key = jax.random.PRNGKey(0)
    ks = jax.random.split(key, 7)
    s = float(1.0 / (H ** 0.5))  # PyTorch default U(-1/sqrt(H), 1/sqrt(H))

    w_ih_pt = jax.random.uniform(ks[0], (4 * H, N_STATES), jnp.float32, -s, s)
    w_hh_pt = jax.random.uniform(ks[1], (4 * H, H), jnp.float32, -s, s)
    b_ih = jax.random.uniform(ks[2], (4 * H,), jnp.float32, -s, s)
    b_hh = jax.random.uniform(ks[3], (4 * H,), jnp.float32, -s, s)
    w_out_pt = jax.random.uniform(ks[4], (N_ACTIONS, H), jnp.float32, -s, s)
    b_out = jax.random.uniform(ks[5], (N_ACTIONS,), jnp.float32, -s, s)

    x = jax.random.normal(ks[6], (B, T, N_STATES), jnp.float32)

    kparams = prepare_kernel_params(w_ih_pt, w_hh_pt, b_ih, b_hh, w_out_pt, b_out)
    out = jax.block_until_ready(lstm_net_forward(x, kparams))
    ref = lstm_net_reference(x, w_ih_pt, w_hh_pt, b_ih, b_hh, w_out_pt, b_out)

    assert out.shape == (B, T, N_ACTIONS), out.shape
    err = float(jnp.max(jnp.abs(out - ref)))
    assert jnp.allclose(out, ref, rtol=1e-5, atol=1e-5), err
    print("KERNEL_OK")
</pallas_src>

<mosaic_0001>
module attributes {stable_mosaic.version = 11 : i64} {
  func.func @_lstm_net_kernel(%arg0: memref<16x16xf32, #tpu.memory_space<vmem>>, %arg1: memref<16x32xf32, #tpu.memory_space<vmem>>, %arg2: memref<8x32xf32, #tpu.memory_space<vmem>>, %arg3: memref<1x32xf32, #tpu.memory_space<vmem>>, %arg4: memref<8x4xf32, #tpu.memory_space<vmem>>, %arg5: memref<1x4xf32, #tpu.memory_space<vmem>>, %arg6: memref<2x8xf32, #tpu.memory_space<vmem>>, %arg7: memref<2x8xf32, #tpu.memory_space<vmem>>, %arg8: memref<16x4xf32, #tpu.memory_space<vmem>>) attributes {dimension_semantics = [], scalar_prefetch = 0 : i64, scratch_operands = 0 : i64, tpu.core_type = #tpu.core_type<tc>} {
    %c0 = arith.constant 0 : index
    %c0_0 = arith.constant 0 : index
    %0 = vector.load %arg2[%c0, %c0_0] : memref<8x32xf32, #tpu.memory_space<vmem>>, vector<8x32xf32>
    %c0_1 = arith.constant 0 : index
    %c0_2 = arith.constant 0 : index
    %1 = vector.load %arg0[%c0_1, %c0_2] : memref<16x16xf32, #tpu.memory_space<vmem>>, vector<16x16xf32>
    %c0_3 = arith.constant 0 : index
    %c0_4 = arith.constant 0 : index
    %2 = vector.load %arg1[%c0_3, %c0_4] : memref<16x32xf32, #tpu.memory_space<vmem>>, vector<16x32xf32>
    %cst = arith.constant dense<0.000000e+00> : vector<16x32xf32>
    %3 = tpu.matmul %1, %2, %cst {dimension_numbers = #tpu.dot_dimension_numbers<[1], [0], [0], [1], [0, 0, 1, 1], [], []>} : vector<16x16xf32>, vector<16x32xf32>, vector<16x32xf32> -> vector<16x32xf32>
    %c0_5 = arith.constant 0 : index
    %c0_6 = arith.constant 0 : index
    %4 = vector.load %arg3[%c0_5, %c0_6] : memref<1x32xf32, #tpu.memory_space<vmem>>, vector<1x32xf32>
    %5 = vector.broadcast %4 : vector<1x32xf32> to vector<16x32xf32>
    %6 = arith.addf %3, %5 : vector<16x32xf32>
    %7 = vector.extract_strided_slice %0 {offsets = [0, 0], sizes = [1, 32], strides = [1, 1]} : vector<8x32xf32> to vector<1x32xf32>
    %8 = vector.shape_cast %7 : vector<1x32xf32> to vector<1x32xf32>
    %9 = vector.broadcast %8 : vector<1x32xf32> to vector<2x32xf32>
    %10 = vector.extract_strided_slice %0 {offsets = [1, 0], sizes = [1, 32], strides = [1, 1]} : vector<8x32xf32> to vector<1x32xf32>
    %11 = vector.shape_cast %10 : vector<1x32xf32> to vector<1x32xf32>
    %12 = vector.broadcast %11 : vector<1x32xf32> to vector<2x32xf32>
    %13 = vector.extract_strided_slice %0 {offsets = [2, 0], sizes = [1, 32], strides = [1, 1]} : vector<8x32xf32> to vector<1x32xf32>
    %14 = vector.shape_cast %13 : vector<1x32xf32> to vector<1x32xf32>
    %15 = vector.broadcast %14 : vector<1x32xf32> to vector<2x32xf32>
    %16 = vector.extract_strided_slice %0 {offsets = [3, 0], sizes = [1, 32], strides = [1, 1]} : vector<8x32xf32> to vector<1x32xf32>
    %17 = vector.shape_cast %16 : vector<1x32xf32> to vector<1x32xf32>
    %18 = vector.broadcast %17 : vector<1x32xf32> to vector<2x32xf32>
    %19 = vector.extract_strided_slice %0 {offsets = [4, 0], sizes = [1, 32], strides = [1, 1]} : vector<8x32xf32> to vector<1x32xf32>
    %20 = vector.shape_cast %19 : vector<1x32xf32> to vector<1x32xf32>
    %21 = vector.broadcast %20 : vector<1x32xf32> to vector<2x32xf32>
    %c0_7 = arith.constant 0 : index
    %c0_8 = arith.constant 0 : index
    %22 = vector.load %arg6[%c0_7, %c0_8] : memref<2x8xf32, #tpu.memory_space<vmem>>, vector<2x8xf32>
    %c0_9 = arith.constant 0 : index
    %c0_10 = arith.constant 0 : index
    %23 = vector.load %arg7[%c0_9, %c0_10] : memref<2x8xf32, #tpu.memory_space<vmem>>, vector<2x8xf32>
    %24 = vector.extract_strided_slice %6 {offsets = [0, 0], sizes = [2, 32], strides = [1, 1]} : vector<16x32xf32> to vector<2x32xf32>
    %25 = vector.extract_strided_slice %22 {offsets = [0, 0], sizes = [2, 1], strides = [1, 1]} : vector<2x8xf32> to vector<2x1xf32>
    %26 = vector.broadcast %25 : vector<2x1xf32> to vector<2x32xf32>
    %27 = arith.mulf %26, %9 : vector<2x32xf32>
    %28 = vector.extract_strided_slice %22 {offsets = [0, 1], sizes = [2, 1], strides = [1, 1]} : vector<2x8xf32> to vector<2x1xf32>
    %29 = vector.broadcast %28 : vector<2x1xf32> to vector<2x32xf32>
    %30 = arith.mulf %29, %12 : vector<2x32xf32>
    %31 = vector.extract_strided_slice %22 {offsets = [0, 2], sizes = [2, 1], strides = [1, 1]} : vector<2x8xf32> to vector<2x1xf32>
    %32 = vector.broadcast %31 : vector<2x1xf32> to vector<2x32xf32>
    %33 = arith.mulf %32, %15 : vector<2x32xf32>
    %34 = vector.extract_strided_slice %22 {offsets = [0, 3], sizes = [2, 1], strides = [1, 1]} : vector<2x8xf32> to vector<2x1xf32>
    %35 = vector.broadcast %34 : vector<2x1xf32> to vector<2x32xf32>
    %36 = arith.mulf %35, %18 : vector<2x32xf32>
    %37 = vector.extract_strided_slice %22 {offsets = [0, 4], sizes = [2, 1], strides = [1, 1]} : vector<2x8xf32> to vector<2x1xf32>
    %38 = vector.broadcast %37 : vector<2x1xf32> to vector<2x32xf32>
    %39 = arith.mulf %38, %21 : vector<2x32xf32>
    %40 = arith.addf %24, %27 : vector<2x32xf32>
    %41 = arith.addf %30, %33 : vector<2x32xf32>
    %42 = arith.addf %36, %39 : vector<2x32xf32>
    %43 = arith.addf %40, %41 : vector<2x32xf32>
    %44 = arith.addf %43, %42 : vector<2x32xf32>
    %cst_11 = arith.constant 5.000000e-01 : f32
    %45 = vector.broadcast %cst_11 : f32 to vector<2x32xf32>
    %46 = arith.mulf %45, %44 : vector<2x32xf32>
    %47 = math.tanh %46 : vector<2x32xf32>
    %cst_12 = arith.constant 1.000000e+00 : f32
    %48 = vector.broadcast %cst_12 : f32 to vector<2x32xf32>
    %49 = arith.addf %47, %48 : vector<2x32xf32>
    %cst_13 = arith.constant 5.000000e-01 : f32
    %50 = vector.broadcast %cst_13 : f32 to vector<2x32xf32>
    %51 = arith.mulf %50, %49 : vector<2x32xf32>
    %52 = math.tanh %44 : vector<2x32xf32>
    %53 = vector.extract_strided_slice %51 {offsets = [0, 0], sizes = [2, 8], strides = [1, 1]} : vector<2x32xf32> to vector<2x8xf32>
    %54 = vector.extract_strided_slice %51 {offsets = [0, 8], sizes = [2, 8], strides = [1, 1]} : vector<2x32xf32> to vector<2x8xf32>
    %55 = vector.extract_strided_slice %52 {offsets = [0, 16], sizes = [2, 8], strides = [1, 1]} : vector<2x32xf32> to vector<2x8xf32>
    %56 = vector.extract_strided_slice %51 {offsets = [0, 24], sizes = [2, 8], strides = [1, 1]} : vector<2x32xf32> to vector<2x8xf32>
    %57 = arith.mulf %54, %23 : vector<2x8xf32>
    %58 = arith.mulf %53, %55 : vector<2x8xf32>
    %59 = arith.addf %57, %58 : vector<2x8xf32>
    %60 = math.tanh %59 : vector<2x8xf32>
    %61 = arith.mulf %56, %60 : vector<2x8xf32>
    %62 = vector.extract_strided_slice %6 {offsets = [2, 0], sizes = [2, 32], strides = [1, 1]} : vector<16x32xf32> to vector<2x32xf32>
    %63 = vector.extract_strided_slice %61 {offsets = [0, 0], sizes = [2, 1], strides = [1, 1]} : vector<2x8xf32> to vector<2x1xf32>
    %64 = vector.broadcast %63 : vector<2x1xf32> to vector<2x32xf32>
    %65 = arith.mulf %64, %9 : vector<2x32xf32>
    %66 = vector.extract_strided_slice %61 {offsets = [0, 1], sizes = [2, 1], strides = [1, 1]} : vector<2x8xf32> to vector<2x1xf32>
    %67 = vector.broadcast %66 : vector<2x1xf32> to vector<2x32xf32>
    %68 = arith.mulf %67, %12 : vector<2x32xf32>
    %69 = vector.extract_strided_slice %61 {offsets = [0, 2], sizes = [2, 1], strides = [1, 1]} : vector<2x8xf32> to vector<2x1xf32>
    %70 = vector.broadcast %69 : vector<2x1xf32> to vector<2x32xf32>
    %71 = arith.mulf %70, %15 : vector<2x32xf32>
    %72 = vector.extract_strided_slice %61 {offsets = [0, 3], sizes = [2, 1], strides = [1, 1]} : vector<2x8xf32> to vector<2x1xf32>
    %73 = vector.broadcast %72 : vector<2x1xf32> to vector<2x32xf32>
    %74 = arith.mulf %73, %18 : vector<2x32xf32>
    %75 = vector.extract_strided_slice %61 {offsets = [0, 4], sizes = [2, 1], strides = [1, 1]} : vector<2x8xf32> to vector<2x1xf32>
    %76 = vector.broadcast %75 : vector<2x1xf32> to vector<2x32xf32>
    %77 = arith.mulf %76, %21 : vector<2x32xf32>
    %78 = arith.addf %62, %65 : vector<2x32xf32>
    %79 = arith.addf %68, %71 : vector<2x32xf32>
    %80 = arith.addf %74, %77 : vector<2x32xf32>
    %81 = arith.addf %78, %79 : vector<2x32xf32>
    %82 = arith.addf %81, %80 : vector<2x32xf32>
    %cst_14 = arith.constant 5.000000e-01 : f32
    %83 = vector.broadcast %cst_14 : f32 to vector<2x32xf32>
    %84 = arith.mulf %83, %82 : vector<2x32xf32>
    %85 = math.tanh %84 : vector<2x32xf32>
    %cst_15 = arith.constant 1.000000e+00 : f32
    %86 = vector.broadcast %cst_15 : f32 to vector<2x32xf32>
    %87 = arith.addf %85, %86 : vector<2x32xf32>
    %cst_16 = arith.constant 5.000000e-01 : f32
    %88 = vector.broadcast %cst_16 : f32 to vector<2x32xf32>
    %89 = arith.mulf %88, %87 : vector<2x32xf32>
    %90 = math.tanh %82 : vector<2x32xf32>
    %91 = vector.extract_strided_slice %89 {offsets = [0, 0], sizes = [2, 8], strides = [1, 1]} : vector<2x32xf32> to vector<2x8xf32>
    %92 = vector.extract_strided_slice %89 {offsets = [0, 8], sizes = [2, 8], strides = [1, 1]} : vector<2x32xf32> to vector<2x8xf32>
    %93 = vector.extract_strided_slice %90 {offsets = [0, 16], sizes = [2, 8], strides = [1, 1]} : vector<2x32xf32> to vector<2x8xf32>
    %94 = vector.extract_strided_slice %89 {offsets = [0, 24], sizes = [2, 8], strides = [1, 1]} : vector<2x32xf32> to vector<2x8xf32>
    %95 = arith.mulf %92, %59 : vector<2x8xf32>
    %96 = arith.mulf %91, %93 : vector<2x8xf32>
    %97 = arith.addf %95, %96 : vector<2x8xf32>
    %98 = math.tanh %97 : vector<2x8xf32>
    %99 = arith.mulf %94, %98 : vector<2x8xf32>
    %100 = vector.extract_strided_slice %6 {offsets = [4, 0], sizes = [2, 32], strides = [1, 1]} : vector<16x32xf32> to vector<2x32xf32>
    %101 = vector.extract_strided_slice %99 {offsets = [0, 0], sizes = [2, 1], strides = [1, 1]} : vector<2x8xf32> to vector<2x1xf32>
    %102 = vector.broadcast %101 : vector<2x1xf32> to vector<2x32xf32>
    %103 = arith.mulf %102, %9 : vector<2x32xf32>
    %104 = vector.extract_strided_slice %99 {offsets = [0, 1], sizes = [2, 1], strides = [1, 1]} : vector<2x8xf32> to vector<2x1xf32>
    %105 = vector.broadcast %104 : vector<2x1xf32> to vector<2x32xf32>
    %106 = arith.mulf %105, %12 : vector<2x32xf32>
    %107 = vector.extract_strided_slice %99 {offsets = [0, 2], sizes = [2, 1], strides = [1, 1]} : vector<2x8xf32> to vector<2x1xf32>
    %108 = vector.broadcast %107 : vector<2x1xf32> to vector<2x32xf32>
    %109 = arith.mulf %108, %15 : vector<2x32xf32>
    %110 = vector.extract_strided_slice %99 {offsets = [0, 3], sizes = [2, 1], strides = [1, 1]} : vector<2x8xf32> to vector<2x1xf32>
    %111 = vector.broadcast %110 : vector<2x1xf32> to vector<2x32xf32>
    %112 = arith.mulf %111, %18 : vector<2x32xf32>
    %113 = vector.extract_strided_slice %99 {offsets = [0, 4], sizes = [2, 1], strides = [1, 1]} : vector<2x8xf32> to vector<2x1xf32>
    %114 = vector.broadcast %113 : vector<2x1xf32> to vector<2x32xf32>
    %115 = arith.mulf %114, %21 : vector<2x32xf32>
    %116 = arith.addf %100, %103 : vector<2x32xf32>
    %117 = arith.addf %106, %109 : vector<2x32xf32>
    %118 = arith.addf %112, %115 : vector<2x32xf32>
    %119 = arith.addf %116, %117 : vector<2x32xf32>
    %120 = arith.addf %119, %118 : vector<2x32xf32>
    %cst_17 = arith.constant 5.000000e-01 : f32
    %121 = vector.broadcast %cst_17 : f32 to vector<2x32xf32>
    %122 = arith.mulf %121, %120 : vector<2x32xf32>
    %123 = math.tanh %122 : vector<2x32xf32>
    %cst_18 = arith.constant 1.000000e+00 : f32
    %124 = vector.broadcast %cst_18 : f32 to vector<2x32xf32>
    %125 = arith.addf %123, %124 : vector<2x32xf32>
    %cst_19 = arith.constant 5.000000e-01 : f32
    %126 = vector.broadcast %cst_19 : f32 to vector<2x32xf32>
    %127 = arith.mulf %126, %125 : vector<2x32xf32>
    %128 = math.tanh %120 : vector<2x32xf32>
    %129 = vector.extract_strided_slice %127 {offsets = [0, 0], sizes = [2, 8], strides = [1, 1]} : vector<2x32xf32> to vector<2x8xf32>
    %130 = vector.extract_strided_slice %127 {offsets = [0, 8], sizes = [2, 8], strides = [1, 1]} : vector<2x32xf32> to vector<2x8xf32>
    %131 = vector.extract_strided_slice %128 {offsets = [0, 16], sizes = [2, 8], strides = [1, 1]} : vector<2x32xf32> to vector<2x8xf32>
    %132 = vector.extract_strided_slice %127 {offsets = [0, 24], sizes = [2, 8], strides = [1, 1]} : vector<2x32xf32> to vector<2x8xf32>
    %133 = arith.mulf %130, %97 : vector<2x8xf32>
    %134 = arith.mulf %129, %131 : vector<2x8xf32>
    %135 = arith.addf %133, %134 : vector<2x8xf32>
    %136 = math.tanh %135 : vector<2x8xf32>
    %137 = arith.mulf %132, %136 : vector<2x8xf32>
    %138 = vector.extract_strided_slice %6 {offsets = [6, 0], sizes = [2, 32], strides = [1, 1]} : vector<16x32xf32> to vector<2x32xf32>
    %139 = vector.extract_strided_slice %137 {offsets = [0, 0], sizes = [2, 1], strides = [1, 1]} : vector<2x8xf32> to vector<2x1xf32>
    %140 = vector.broadcast %139 : vector<2x1xf32> to vector<2x32xf32>
    %141 = arith.mulf %140, %9 : vector<2x32xf32>
    %142 = vector.extract_strided_slice %137 {offsets = [0, 1], sizes = [2, 1], strides = [1, 1]} : vector<2x8xf32> to vector<2x1xf32>
    %143 = vector.broadcast %142 : vector<2x1xf32> to vector<2x32xf32>
    %144 = arith.mulf %143, %12 : vector<2x32xf32>
    %145 = vector.extract_strided_slice %137 {offsets = [0, 2], sizes = [2, 1], strides = [1, 1]} : vector<2x8xf32> to vector<2x1xf32>
    %146 = vector.broadcast %145 : vector<2x1xf32> to vector<2x32xf32>
    %147 = arith.mulf %146, %15 : vector<2x32xf32>
    %148 = vector.extract_strided_slice %137 {offsets = [0, 3], sizes = [2, 1], strides = [1, 1]} : vector<2x8xf32> to vector<2x1xf32>
    %149 = vector.broadcast %148 : vector<2x1xf32> to vector<2x32xf32>
    %150 = arith.mulf %149, %18 : vector<2x32xf32>
    %151 = vector.extract_strided_slice %137 {offsets = [0, 4], sizes = [2, 1], strides = [1, 1]} : vector<2x8xf32> to vector<2x1xf32>
    %152 = vector.broadcast %151 : vector<2x1xf32> to vector<2x32xf32>
    %153 = arith.mulf %152, %21 : vector<2x32xf32>
    %154 = arith.addf %138, %141 : vector<2x32xf32>
    %155 = arith.addf %144, %147 : vector<2x32xf32>
    %156 = arith.addf %150, %153 : vector<2x32xf32>
    %157 = arith.addf %154, %155 : vector<2x32xf32>
    %158 = arith.addf %157, %156 : vector<2x32xf32>
    %cst_20 = arith.constant 5.000000e-01 : f32
    %159 = vector.broadcast %cst_20 : f32 to vector<2x32xf32>
    %160 = arith.mulf %159, %158 : vector<2x32xf32>
    %161 = math.tanh %160 : vector<2x32xf32>
    %cst_21 = arith.constant 1.000000e+00 : f32
    %162 = vector.broadcast %cst_21 : f32 to vector<2x32xf32>
    %163 = arith.addf %161, %162 : vector<2x32xf32>
    %cst_22 = arith.constant 5.000000e-01 : f32
    %164 = vector.broadcast %cst_22 : f32 to vector<2x32xf32>
    %165 = arith.mulf %164, %163 : vector<2x32xf32>
    %166 = math.tanh %158 : vector<2x32xf32>
    %167 = vector.extract_strided_slice %165 {offsets = [0, 0], sizes = [2, 8], strides = [1, 1]} : vector<2x32xf32> to vector<2x8xf32>
    %168 = vector.extract_strided_slice %165 {offsets = [0, 8], sizes = [2, 8], strides = [1, 1]} : vector<2x32xf32> to vector<2x8xf32>
    %169 = vector.extract_strided_slice %166 {offsets = [0, 16], sizes = [2, 8], strides = [1, 1]} : vector<2x32xf32> to vector<2x8xf32>
    %170 = vector.extract_strided_slice %165 {offsets = [0, 24], sizes = [2, 8], strides = [1, 1]} : vector<2x32xf32> to vector<2x8xf32>
    %171 = arith.mulf %168, %135 : vector<2x8xf32>
    %172 = arith.mulf %167, %169 : vector<2x8xf32>
    %173 = arith.addf %171, %172 : vector<2x8xf32>
    %174 = math.tanh %173 : vector<2x8xf32>
    %175 = arith.mulf %170, %174 : vector<2x8xf32>
    %176 = vector.extract_strided_slice %6 {offsets = [8, 0], sizes = [2, 32], strides = [1, 1]} : vector<16x32xf32> to vector<2x32xf32>
    %177 = vector.extract_strided_slice %175 {offsets = [0, 0], sizes = [2, 1], strides = [1, 1]} : vector<2x8xf32> to vector<2x1xf32>
    %178 = vector.broadcast %177 : vector<2x1xf32> to vector<2x32xf32>
    %179 = arith.mulf %178, %9 : vector<2x32xf32>
    %180 = vector.extract_strided_slice %175 {offsets = [0, 1], sizes = [2, 1], strides = [1, 1]} : vector<2x8xf32> to vector<2x1xf32>
    %181 = vector.broadcast %180 : vector<2x1xf32> to vector<2x32xf32>
    %182 = arith.mulf %181, %12 : vector<2x32xf32>
    %183 = vector.extract_strided_slice %175 {offsets = [0, 2], sizes = [2, 1], strides = [1, 1]} : vector<2x8xf32> to vector<2x1xf32>
    %184 = vector.broadcast %183 : vector<2x1xf32> to vector<2x32xf32>
    %185 = arith.mulf %184, %15 : vector<2x32xf32>
    %186 = vector.extract_strided_slice %175 {offsets = [0, 3], sizes = [2, 1], strides = [1, 1]} : vector<2x8xf32> to vector<2x1xf32>
    %187 = vector.broadcast %186 : vector<2x1xf32> to vector<2x32xf32>
    %188 = arith.mulf %187, %18 : vector<2x32xf32>
    %189 = vector.extract_strided_slice %175 {offsets = [0, 4], sizes = [2, 1], strides = [1, 1]} : vector<2x8xf32> to vector<2x1xf32>
    %190 = vector.broadcast %189 : vector<2x1xf32> to vector<2x32xf32>
    %191 = arith.mulf %190, %21 : vector<2x32xf32>
    %192 = arith.addf %176, %179 : vector<2x32xf32>
    %193 = arith.addf %182, %185 : vector<2x32xf32>
    %194 = arith.addf %188, %191 : vector<2x32xf32>
    %195 = arith.addf %192, %193 : vector<2x32xf32>
    %196 = arith.addf %195, %194 : vector<2x32xf32>
    %cst_23 = arith.constant 5.000000e-01 : f32
    %197 = vector.broadcast %cst_23 : f32 to vector<2x32xf32>
    %198 = arith.mulf %197, %196 : vector<2x32xf32>
    %199 = math.tanh %198 : vector<2x32xf32>
    %cst_24 = arith.constant 1.000000e+00 : f32
    %200 = vector.broadcast %cst_24 : f32 to vector<2x32xf32>
    %201 = arith.addf %199, %200 : vector<2x32xf32>
    %cst_25 = arith.constant 5.000000e-01 : f32
    %202 = vector.broadcast %cst_25 : f32 to vector<2x32xf32>
    %203 = arith.mulf %202, %201 : vector<2x32xf32>
    %204 = math.tanh %196 : vector<2x32xf32>
    %205 = vector.extract_strided_slice %203 {offsets = [0, 0], sizes = [2, 8], strides = [1, 1]} : vector<2x32xf32> to vector<2x8xf32>
    %206 = vector.extract_strided_slice %203 {offsets = [0, 8], sizes = [2, 8], strides = [1, 1]} : vector<2x32xf32> to vector<2x8xf32>
    %207 = vector.extract_strided_slice %204 {offsets = [0, 16], sizes = [2, 8], strides = [1, 1]} : vector<2x32xf32> to vector<2x8xf32>
    %208 = vector.extract_strided_slice %203 {offsets = [0, 24], sizes = [2, 8], strides = [1, 1]} : vector<2x32xf32> to vector<2x8xf32>
    %209 = arith.mulf %206, %173 : vector<2x8xf32>
    %210 = arith.mulf %205, %207 : vector<2x8xf32>
    %211 = arith.addf %209, %210 : vector<2x8xf32>
    %212 = math.tanh %211 : vector<2x8xf32>
    %213 = arith.mulf %208, %212 : vector<2x8xf32>
    %214 = vector.extract_strided_slice %6 {offsets = [10, 0], sizes = [2, 32], strides = [1, 1]} : vector<16x32xf32> to vector<2x32xf32>
    %215 = vector.extract_strided_slice %213 {offsets = [0, 0], sizes = [2, 1], strides = [1, 1]} : vector<2x8xf32> to vector<2x1xf32>
    %216 = vector.broadcast %215 : vector<2x1xf32> to vector<2x32xf32>
    %217 = arith.mulf %216, %9 : vector<2x32xf32>
    %218 = vector.extract_strided_slice %213 {offsets = [0, 1], sizes = [2, 1], strides = [1, 1]} : vector<2x8xf32> to vector<2x1xf32>
    %219 = vector.broadcast %218 : vector<2x1xf32> to vector<2x32xf32>
    %220 = arith.mulf %219, %12 : vector<2x32xf32>
    %221 = vector.extract_strided_slice %213 {offsets = [0, 2], sizes = [2, 1], strides = [1, 1]} : vector<2x8xf32> to vector<2x1xf32>
    %222 = vector.broadcast %221 : vector<2x1xf32> to vector<2x32xf32>
    %223 = arith.mulf %222, %15 : vector<2x32xf32>
    %224 = vector.extract_strided_slice %213 {offsets = [0, 3], sizes = [2, 1], strides = [1, 1]} : vector<2x8xf32> to vector<2x1xf32>
    %225 = vector.broadcast %224 : vector<2x1xf32> to vector<2x32xf32>
    %226 = arith.mulf %225, %18 : vector<2x32xf32>
    %227 = vector.extract_strided_slice %213 {offsets = [0, 4], sizes = [2, 1], strides = [1, 1]} : vector<2x8xf32> to vector<2x1xf32>
    %228 = vector.broadcast %227 : vector<2x1xf32> to vector<2x32xf32>
    %229 = arith.mulf %228, %21 : vector<2x32xf32>
    %230 = arith.addf %214, %217 : vector<2x32xf32>
    %231 = arith.addf %220, %223 : vector<2x32xf32>
    %232 = arith.addf %226, %229 : vector<2x32xf32>
    %233 = arith.addf %230, %231 : vector<2x32xf32>
    %234 = arith.addf %233, %232 : vector<2x32xf32>
    %cst_26 = arith.constant 5.000000e-01 : f32
    %235 = vector.broadcast %cst_26 : f32 to vector<2x32xf32>
    %236 = arith.mulf %235, %234 : vector<2x32xf32>
    %237 = math.tanh %236 : vector<2x32xf32>
    %cst_27 = arith.constant 1.000000e+00 : f32
    %238 = vector.broadcast %cst_27 : f32 to vector<2x32xf32>
    %239 = arith.addf %237, %238 : vector<2x32xf32>
    %cst_28 = arith.constant 5.000000e-01 : f32
    %240 = vector.broadcast %cst_28 : f32 to vector<2x32xf32>
    %241 = arith.mulf %240, %239 : vector<2x32xf32>
    %242 = math.tanh %234 : vector<2x32xf32>
    %243 = vector.extract_strided_slice %241 {offsets = [0, 0], sizes = [2, 8], strides = [1, 1]} : vector<2x32xf32> to vector<2x8xf32>
    %244 = vector.extract_strided_slice %241 {offsets = [0, 8], sizes = [2, 8], strides = [1, 1]} : vector<2x32xf32> to vector<2x8xf32>
    %245 = vector.extract_strided_slice %242 {offsets = [0, 16], sizes = [2, 8], strides = [1, 1]} : vector<2x32xf32> to vector<2x8xf32>
    %246 = vector.extract_strided_slice %241 {offsets = [0, 24], sizes = [2, 8], strides = [1, 1]} : vector<2x32xf32> to vector<2x8xf32>
    %247 = arith.mulf %244, %211 : vector<2x8xf32>
    %248 = arith.mulf %243, %245 : vector<2x8xf32>
    %249 = arith.addf %247, %248 : vector<2x8xf32>
    %250 = math.tanh %249 : vector<2x8xf32>
    %251 = arith.mulf %246, %250 : vector<2x8xf32>
    %252 = vector.extract_strided_slice %6 {offsets = [12, 0], sizes = [2, 32], strides = [1, 1]} : vector<16x32xf32> to vector<2x32xf32>
    %253 = vector.extract_strided_slice %251 {offsets = [0, 0], sizes = [2, 1], strides = [1, 1]} : vector<2x8xf32> to vector<2x1xf32>
    %254 = vector.broadcast %253 : vector<2x1xf32> to vector<2x32xf32>
    %255 = arith.mulf %254, %9 : vector<2x32xf32>
    %256 = vector.extract_strided_slice %251 {offsets = [0, 1], sizes = [2, 1], strides = [1, 1]} : vector<2x8xf32> to vector<2x1xf32>
    %257 = vector.broadcast %256 : vector<2x1xf32> to vector<2x32xf32>
    %258 = arith.mulf %257, %12 : vector<2x32xf32>
    %259 = vector.extract_strided_slice %251 {offsets = [0, 2], sizes = [2, 1], strides = [1, 1]} : vector<2x8xf32> to vector<2x1xf32>
    %260 = vector.broadcast %259 : vector<2x1xf32> to vector<2x32xf32>
    %261 = arith.mulf %260, %15 : vector<2x32xf32>
    %262 = vector.extract_strided_slice %251 {offsets = [0, 3], sizes = [2, 1], strides = [1, 1]} : vector<2x8xf32> to vector<2x1xf32>
    %263 = vector.broadcast %262 : vector<2x1xf32> to vector<2x32xf32>
    %264 = arith.mulf %263, %18 : vector<2x32xf32>
    %265 = vector.extract_strided_slice %251 {offsets = [0, 4], sizes = [2, 1], strides = [1, 1]} : vector<2x8xf32> to vector<2x1xf32>
    %266 = vector.broadcast %265 : vector<2x1xf32> to vector<2x32xf32>
    %267 = arith.mulf %266, %21 : vector<2x32xf32>
    %268 = arith.addf %252, %255 : vector<2x32xf32>
    %269 = arith.addf %258, %261 : vector<2x32xf32>
    %270 = arith.addf %264, %267 : vector<2x32xf32>
    %271 = arith.addf %268, %269 : vector<2x32xf32>
    %272 = arith.addf %271, %270 : vector<2x32xf32>
    %cst_29 = arith.constant 5.000000e-01 : f32
    %273 = vector.broadcast %cst_29 : f32 to vector<2x32xf32>
    %274 = arith.mulf %273, %272 : vector<2x32xf32>
    %275 = math.tanh %274 : vector<2x32xf32>
    %cst_30 = arith.constant 1.000000e+00 : f32
    %276 = vector.broadcast %cst_30 : f32 to vector<2x32xf32>
    %277 = arith.addf %275, %276 : vector<2x32xf32>
    %cst_31 = arith.constant 5.000000e-01 : f32
    %278 = vector.broadcast %cst_31 : f32 to vector<2x32xf32>
    %279 = arith.mulf %278, %277 : vector<2x32xf32>
    %280 = math.tanh %272 : vector<2x32xf32>
    %281 = vector.extract_strided_slice %279 {offsets = [0, 0], sizes = [2, 8], strides = [1, 1]} : vector<2x32xf32> to vector<2x8xf32>
    %282 = vector.extract_strided_slice %279 {offsets = [0, 8], sizes = [2, 8], strides = [1, 1]} : vector<2x32xf32> to vector<2x8xf32>
    %283 = vector.extract_strided_slice %280 {offsets = [0, 16], sizes = [2, 8], strides = [1, 1]} : vector<2x32xf32> to vector<2x8xf32>
    %284 = vector.extract_strided_slice %279 {offsets = [0, 24], sizes = [2, 8], strides = [1, 1]} : vector<2x32xf32> to vector<2x8xf32>
    %285 = arith.mulf %282, %249 : vector<2x8xf32>
    %286 = arith.mulf %281, %283 : vector<2x8xf32>
    %287 = arith.addf %285, %286 : vector<2x8xf32>
    %288 = math.tanh %287 : vector<2x8xf32>
    %289 = arith.mulf %284, %288 : vector<2x8xf32>
    %290 = vector.extract_strided_slice %6 {offsets = [14, 0], sizes = [2, 32], strides = [1, 1]} : vector<16x32xf32> to vector<2x32xf32>
    %291 = vector.extract_strided_slice %289 {offsets = [0, 0], sizes = [2, 1], strides = [1, 1]} : vector<2x8xf32> to vector<2x1xf32>
    %292 = vector.broadcast %291 : vector<2x1xf32> to vector<2x32xf32>
    %293 = arith.mulf %292, %9 : vector<2x32xf32>
    %294 = vector.extract_strided_slice %289 {offsets = [0, 1], sizes = [2, 1], strides = [1, 1]} : vector<2x8xf32> to vector<2x1xf32>
    %295 = vector.broadcast %294 : vector<2x1xf32> to vector<2x32xf32>
    %296 = arith.mulf %295, %12 : vector<2x32xf32>
    %297 = vector.extract_strided_slice %289 {offsets = [0, 2], sizes = [2, 1], strides = [1, 1]} : vector<2x8xf32> to vector<2x1xf32>
    %298 = vector.broadcast %297 : vector<2x1xf32> to vector<2x32xf32>
    %299 = arith.mulf %298, %15 : vector<2x32xf32>
    %300 = vector.extract_strided_slice %289 {offsets = [0, 3], sizes = [2, 1], strides = [1, 1]} : vector<2x8xf32> to vector<2x1xf32>
    %301 = vector.broadcast %300 : vector<2x1xf32> to vector<2x32xf32>
    %302 = arith.mulf %301, %18 : vector<2x32xf32>
    %303 = vector.extract_strided_slice %289 {offsets = [0, 4], sizes = [2, 1], strides = [1, 1]} : vector<2x8xf32> to vector<2x1xf32>
    %304 = vector.broadcast %303 : vector<2x1xf32> to vector<2x32xf32>
    %305 = arith.mulf %304, %21 : vector<2x32xf32>
    %306 = arith.addf %290, %293 : vector<2x32xf32>
    %307 = arith.addf %296, %299 : vector<2x32xf32>
    %308 = arith.addf %302, %305 : vector<2x32xf32>
    %309 = arith.addf %306, %307 : vector<2x32xf32>
    %310 = arith.addf %309, %308 : vector<2x32xf32>
    %cst_32 = arith.constant 5.000000e-01 : f32
    %311 = vector.broadcast %cst_32 : f32 to vector<2x32xf32>
    %312 = arith.mulf %311, %310 : vector<2x32xf32>
    %313 = math.tanh %312 : vector<2x32xf32>
    %cst_33 = arith.constant 1.000000e+00 : f32
    %314 = vector.broadcast %cst_33 : f32 to vector<2x32xf32>
    %315 = arith.addf %313, %314 : vector<2x32xf32>
    %cst_34 = arith.constant 5.000000e-01 : f32
    %316 = vector.broadcast %cst_34 : f32 to vector<2x32xf32>
    %317 = arith.mulf %316, %315 : vector<2x32xf32>
    %318 = math.tanh %310 : vector<2x32xf32>
    %319 = vector.extract_strided_slice %317 {offsets = [0, 0], sizes = [2, 8], strides = [1, 1]} : vector<2x32xf32> to vector<2x8xf32>
    %320 = vector.extract_strided_slice %317 {offsets = [0, 8], sizes = [2, 8], strides = [1, 1]} : vector<2x32xf32> to vector<2x8xf32>
    %321 = vector.extract_strided_slice %318 {offsets = [0, 16], sizes = [2, 8], strides = [1, 1]} : vector<2x32xf32> to vector<2x8xf32>
    %322 = vector.extract_strided_slice %317 {offsets = [0, 24], sizes = [2, 8], strides = [1, 1]} : vector<2x32xf32> to vector<2x8xf32>
    %323 = arith.mulf %320, %287 : vector<2x8xf32>
    %324 = arith.mulf %319, %321 : vector<2x8xf32>
    %325 = arith.addf %323, %324 : vector<2x8xf32>
    %326 = math.tanh %325 : vector<2x8xf32>
    %327 = arith.mulf %322, %326 : vector<2x8xf32>
    %328 = tpu.concatenate %61, %99, %137, %175, %213, %251, %289, %327 in 0 : vector<2x8xf32>, vector<2x8xf32>, vector<2x8xf32>, vector<2x8xf32>, vector<2x8xf32>, vector<2x8xf32>, vector<2x8xf32>, vector<2x8xf32> -> vector<16x8xf32>
    %c0_35 = arith.constant 0 : index
    %c0_36 = arith.constant 0 : index
    %329 = vector.load %arg4[%c0_35, %c0_36] : memref<8x4xf32, #tpu.memory_space<vmem>>, vector<8x4xf32>
    %cst_37 = arith.constant dense<0.000000e+00> : vector<16x4xf32>
    %330 = tpu.matmul %328, %329, %cst_37 {dimension_numbers = #tpu.dot_dimension_numbers<[1], [0], [0], [1], [0, 0, 1, 1], [], []>} : vector<16x8xf32>, vector<8x4xf32>, vector<16x4xf32> -> vector<16x4xf32>
    %c0_38 = arith.constant 0 : index
    %c0_39 = arith.constant 0 : index
    %331 = vector.load %arg5[%c0_38, %c0_39] : memref<1x4xf32, #tpu.memory_space<vmem>>, vector<1x4xf32>
    %332 = vector.broadcast %331 : vector<1x4xf32> to vector<16x4xf32>
    %333 = arith.addf %330, %332 : vector<16x4xf32>
    %c0_40 = arith.constant 0 : index
    %c0_41 = arith.constant 0 : index
    %334 = vector.load %arg8[%c0_40, %c0_41] : memref<16x4xf32, #tpu.memory_space<vmem>>, vector<16x4xf32>
    tpu.vector_store %arg8[%c0_40, %c0_41], %333 {strides = array<i32>} : memref<16x4xf32, #tpu.memory_space<vmem>>, vector<16x4xf32>,
    return
  }
}

</mosaic_0001>

<llo_original>
// kernel: tpu_custom_call.1
$region0: #{tpu_custom_call.1}
  #allocation0 [shape = 'u32[]', space=smem, size = 0x4, offset = 0x4, fixed_abs, tag = 'smem constant byte address 0x4 - core index']
  #allocation1 [shape = 'u32[144,128]{1,0:T(1,128)}', space=vmem, size = 0x12000, scoped, tag = 'internal scratch']
  %s0 = inlined_call_operand.hbm [shape: f32[16,16], index: 0, kind: input, shape index: {}]
  %s1 = inlined_call_operand.hbm [shape: f32[16,32], index: 1, kind: input, shape index: {}]
  %s2 = inlined_call_operand.vmem [shape: f32[8,32], index: 2, kind: input, shape index: {}]
  %s3 = inlined_call_operand.vmem [shape: f32[1,32], index: 3, kind: input, shape index: {}]
  %s4 = inlined_call_operand.vmem [shape: f32[8,4], index: 4, kind: input, shape index: {}]
  %s5 = inlined_call_operand.vmem [shape: f32[1,4], index: 5, kind: input, shape index: {}]
  %s6 = inlined_call_operand.vmem [shape: f32[2,8], index: 6, kind: input, shape index: {}]
  %s7 = inlined_call_operand.vmem [shape: f32[2,8], index: 7, kind: input, shape index: {}]
  %s8 = inlined_call_operand.vmem [shape: f32[16,4], index: 8, kind: output, shape index: {}]
  %s9 = sld [smem:[#allocation0]]
  $region50: #{tpu_custom_call.1} parent=0
    _
  %s11 = ssub.s32 1, %s9
  %s12 = scalar_select 0, %s11, %s9
  $region1: #{tpu_custom_call.1} parent=0
    #allocation2 [shape = 'u8[8192]{0}', space=vmem, size = 0x2000, scoped, tag = 'input window, operand 0, single buffered']
    #allocation3 [shape = 's32[1]{0}', space=sflag, size = 0x4, scoped, tag = 'scoped memory for tpu_custom_call.1']
    #allocation4 [shape = 'u8[8192]{0}', space=vmem, size = 0x2000, scoped, tag = 'input window, operand 1, single buffered']
    #allocation5 [shape = 's32[1]{0}', space=sflag, size = 0x4, scoped, tag = 'scoped memory for tpu_custom_call.1']
    %13 = vsyncpa [#allocation3], 0
    %14 = vsyncpa [#allocation5], 0
    // Predicated region
    $region2: #{tpu_custom_call.1} parent=1 // pred_check
      _
    $region3: #{tpu_custom_call.1} parent=1 // pred_check_branch
      %16 = sbr.rel (0) target = $region5
    $region4: #{tpu_custom_call.1} parent=1 // pred_region
      %s18 = ssub.s32 256, 256
      %19 = vsyncadd [#allocation3], %s18
      %s20 = sshll.u32 [#allocation2], 4
      %s21 = int_to_ptr.vmem [resolvable:$true] %s20
      %26 = dma.hbm_to_vmem [thread:$0]  %s0, 256, %s21, [#allocation3], 128, 128, 8
    $region5: #{tpu_custom_call.1} parent=1 // pred_fallthru
      _
    // Predicated region
    $region6: #{tpu_custom_call.1} parent=1 // pred_check
      _
    $region7: #{tpu_custom_call.1} parent=1 // pred_check_branch
      %28 = sbr.rel (0) target = $region9
    $region8: #{tpu_custom_call.1} parent=1 // pred_region
      %s30 = ssub.s32 256, 256
      %31 = vsyncadd [#allocation5], %s30
      %s32 = sshll.u32 [#allocation4], 4
      %s33 = int_to_ptr.vmem [resolvable:$true] %s32
      %38 = dma.hbm_to_vmem [thread:$0]  %s1, 256, %s33, [#allocation5], 128, 128, 8
    $region9: #{tpu_custom_call.1} parent=1 // pred_fallthru
      _
    // Predicated region
    $region10: #{tpu_custom_call.1} parent=1 // pred_check
      _
    $region11: #{tpu_custom_call.1} parent=1 // pred_check_branch
      %40 = sbr.rel (0) target = $region13
    $region12: #{tpu_custom_call.1} parent=1 // pred_region
      _
    $region13: #{tpu_custom_call.1} parent=1 // pred_fallthru
      _
    // Predicated region
    $region14: #{tpu_custom_call.1} parent=1 // pred_check
      _
    $region15: #{tpu_custom_call.1} parent=1 // pred_check_branch
      %42 = sbr.rel (0) target = $region17
    $region16: #{tpu_custom_call.1} parent=1 // pred_region
      _
    $region17: #{tpu_custom_call.1} parent=1 // pred_fallthru
      _
    // Predicated region
    $region18: #{tpu_custom_call.1} parent=1 // pred_check
      _
    $region19: #{tpu_custom_call.1} parent=1 // pred_check_branch
      %44 = sbr.rel (0) target = $region21
    $region20: #{tpu_custom_call.1} parent=1 // pred_region
      _
    $region21: #{tpu_custom_call.1} parent=1 // pred_fallthru
      _
    // Predicated region
    $region22: #{tpu_custom_call.1} parent=1 // pred_check
      _
    $region23: #{tpu_custom_call.1} parent=1 // pred_check_branch
      %46 = sbr.rel (0) target = $region25
    $region24: #{tpu_custom_call.1} parent=1 // pred_region
      _
    $region25: #{tpu_custom_call.1} parent=1 // pred_fallthru
      _
    // Predicated region
    $region26: #{tpu_custom_call.1} parent=1 // pred_check
      _
    $region27: #{tpu_custom_call.1} parent=1 // pred_check_branch
      %48 = sbr.rel (0) target = $region29
    $region28: #{tpu_custom_call.1} parent=1 // pred_region
      _
    $region29: #{tpu_custom_call.1} parent=1 // pred_fallthru
      _
    // Predicated region
    $region30: #{tpu_custom_call.1} parent=1 // pred_check
      _
    $region31: #{tpu_custom_call.1} parent=1 // pred_check_branch
      %50 = sbr.rel (0) target = $region33
    $region32: #{tpu_custom_call.1} parent=1 // pred_region
      _
    $region33: #{tpu_custom_call.1} parent=1 // pred_fallthru
      _
    // Predicated region
    $region34: #{tpu_custom_call.1} parent=1 // pred_check
      _
    $region35: #{tpu_custom_call.1} parent=1 // pred_check_branch
      %52 = sbr.rel (0) target = $region37
    $region36: #{tpu_custom_call.1} parent=1 // pred_region
      %53 = dma.done [#allocation3], 256
    $region37: #{tpu_custom_call.1} parent=1 // pred_fallthru
      _
    // Predicated region
    $region38: #{tpu_custom_call.1} parent=1 // pred_check
      _
    $region39: #{tpu_custom_call.1} parent=1 // pred_check_branch
      %55 = sbr.rel (0) target = $region41
    $region40: #{tpu_custom_call.1} parent=1 // pred_region
      %56 = dma.done [#allocation5], 256
    $region41: #{tpu_custom_call.1} parent=1 // pred_fallthru
      _
    %v57 = vld [vmem:[%s2] sm:$0xff]
    %v58 = vld [vmem:[#allocation2] sm:$0xff]
    %v59 = vld [vmem:[#allocation2 + $0x8] sm:$0xff]
    %v60 = vld [vmem:[#allocation4] sm:$0xff]
    %v61 = vld [vmem:[#allocation4 + $0x8] sm:$0xff]
    %v62 = vld [vmem:[%s3] sm:$0x1]
    %v64 = vlaneseq
    %v65 = vshrl.u32 %v64, 7
    %v66 = vsub.s32 0, %v65
    %v67 = vrot.slane %v62, %v66
    %vm69 = vcmask 130048
    %v71 = vsel %vm69, %v58, 0
    %v74 = vsel %vm69, %v59, 0
    %76 = vmatprep.subr.mxu0 0.0
    %77 = vmatpush1.msra.mxu0 %v60
    %78 = vmatprep.subr.mxu0 0.0
    %79 = vmatpush1.msra.mxu0 %v61
    %80 = vmatprep.subr.mxu0 0.0
    %81 = vmatpush1.msra.mxu0 0.0
    %82 = vmatprep.subr.mxu0 0.0
    %83 = vmatpush1.msra.mxu0 0.0
    %84 = vmatprep.subr.mxu0 0.0
    %85 = vmatpush1.msra.mxu0 0.0
    %86 = vmatprep.subr.mxu0 0.0
    %87 = vmatpush1.msra.mxu0 0.0
    %88 = vmatprep.subr.mxu0 0.0
    %89 = vmatpush1.msra.mxu0 0.0
    %90 = vmatprep.subr.mxu0 0.0
    %91 = vmatpush1.msra.mxu0 0.0
    %92 = vmatprep.subr.mxu0 0.0
    %93 = vmatpush1.msra.mxu0 0.0
    %94 = vmatprep.subr.mxu0 0.0
    %95 = vmatpush1.msra.mxu0 0.0
    %96 = vmatprep.subr.mxu0 0.0
    %97 = vmatpush1.msra.mxu0 0.0
    %98 = vmatprep.subr.mxu0 0.0
    %99 = vmatpush1.msra.mxu0 0.0
    %100 = vmatprep.subr.mxu0 0.0
    %101 = vmatpush1.msra.mxu0 0.0
    %102 = vmatprep.subr.mxu0 0.0
    %103 = vmatpush1.msra.mxu0 0.0
    %104 = vmatprep.subr.mxu0 0.0
    %105 = vmatpush1.msra.mxu0 0.0
    %106 = vmatprep.subr.mxu0 0.0
    %107 = vmatpush1.msra.mxu0 0.0
    %108 = vmatprep.subr.mxu0 0.0
    %109 = vmatpush1.msra.mxu0 0.0
    %110 = vmatprep.subr.mxu0 0.0
    %111 = vmatpush1.msra.mxu0 0.0
    %112 = vmatprep.subr.mxu0 0.0
    %113 = vmatpush1.msra.mxu0 0.0
    %114 = vmatprep.subr.mxu0 0.0
    %115 = vmatpush1.msra.mxu0 0.0
    %116 = vmatprep.subr.mxu0 0.0
    %117 = vmatpush1.msra.mxu0 0.0
    %118 = vmatprep.subr.mxu0 0.0
    %119 = vmatpush1.msra.mxu0 0.0
    %120 = vmatprep.subr.mxu0 0.0
    %121 = vmatpush1.msra.mxu0 0.0
    %122 = vmatprep.subr.mxu0 0.0
    %123 = vmatpush1.msra.mxu0 0.0
    %124 = vmatprep.subr.mxu0 0.0
    %125 = vmatpush1.msra.mxu0 0.0
    %126 = vmatprep.subr.mxu0 0.0
    %127 = vmatpush1.msra.mxu0 0.0
    %128 = vmatprep.subr.mxu0 0.0
    %129 = vmatpush1.msra.mxu0 0.0
    %130 = vmatprep.subr.mxu0 0.0
    %131 = vmatpush1.msra.mxu0 0.0
    %132 = vmatprep.subr.mxu0 0.0
    %133 = vmatpush1.msra.mxu0 0.0
    %134 = vmatprep.subr.mxu0 0.0
    %135 = vmatpush1.msra.mxu0 0.0
    %136 = vmatprep.subr.mxu0 0.0
    %137 = vmatpush1.msra.mxu0 0.0
    %138 = vmatprep.subr.mxu0 0.0
    %139 = vmatpush1.msra.mxu0 0.0
    %140 = vmatprep.mubr.f32.mxu0 0.0
    %141 = vmatmul.mubr.f32.gmra.mrb[0].mxu0 %v71
    %v142 = vpop.f32.mrb[0].mxu0
    %v143 = vadd.f32 %v67, %v142
    %v144 = vpop.f32.mrb[0].mxu0
    %145 = vmatprep.mubr.f32.mxu0 0.0
    %146 = vmatmul.mubr.f32.gmra.mrb[0].mxu0 %v74
    %v147 = vpop.f32.mrb[0].mxu0
    %v148 = vadd.f32 %v67, %v147
    %v149 = vpop.f32.mrb[0].mxu0
    %150 = vdwg.mxu0
    %v151 = vlaneseq
    %v152 = vshrl.u32 %v151, 7
    %v153 = vsub.s32 0, %v152
    %v154 = vrot.slane %v57, %v153
    %v155 = vlaneseq
    %v156 = vshrl.u32 %v155, 7
    %v157 = vsub.s32 1, %v156
    %v158 = vrot.slane %v57, %v157
    %v159 = vlaneseq
    %v160 = vshrl.u32 %v159, 7
    %v161 = vsub.s32 2, %v160
    %v162 = vrot.slane %v57, %v161
    %v163 = vlaneseq
    %v164 = vshrl.u32 %v163, 7
    %v165 = vsub.s32 3, %v164
    %v166 = vrot.slane %v57, %v165
    %v167 = vlaneseq
    %v168 = vshrl.u32 %v167, 7
    %v169 = vsub.s32 4, %v168
    %v170 = vrot.slane %v57, %v169
    %v171 = vld [vmem:[%s6] sm:$0x3]
    %v172 = vld [vmem:[%s7] sm:$0x3]
    %174 = vset.pattern.permute.xlu0 0
    %175 = vperm.xlu0 %174, %v171
    %v176 = vpop.permute.xlu0 %175
    %v178 = vmul.f32 %v176, %v154
    %179 = vset.pattern.permute.xlu0 1
    %180 = vperm.xlu0 %179, %v171
    %v181 = vpop.permute.xlu0 %180
    %v183 = vmul.f32 %v181, %v158
    %184 = vset.pattern.permute.xlu0 2
    %185 = vperm.xlu0 %184, %v171
    %v186 = vpop.permute.xlu0 %185
    %v188 = vmul.f32 %v186, %v162
    %189 = vset.pattern.permute.xlu0 3
    %190 = vperm.xlu0 %189, %v171
    %v191 = vpop.permute.xlu0 %190
    %v193 = vmul.f32 %v191, %v166
    %194 = vset.pattern.permute.xlu0 4
    %195 = vperm.xlu0 %194, %v171
    %v196 = vpop.permute.xlu0 %195
    %v198 = vmul.f32 %v196, %v170
    %v199 = vadd.f32 %v143, %v178
    %v200 = vadd.f32 %v183, %v188
    %v201 = vadd.f32 %v193, %v198
    %v202 = vadd.f32 %v199, %v200
    %v203 = vadd.f32 %v202, %v201
    %v204 = vmul.f32 %v203, 0.5
    %v205 = vtanh.pop %v204
    %v206 = vadd.f32 %v205, 1.0
    %v207 = vmul.f32 %v206, 0.5
    %v208 = vtanh.pop %v203
    %210 = vrot.lane.b32.xlu0 %v172, 8
    %v211 = vpop.permute.xlu0 %210
    %v213 = vmul.f32 %v207, %v211
    %215 = vrot.lane.b32.xlu0 %v208, 112
    %v216 = vpop.permute.xlu0 %215
    %v218 = vmul.f32 %v207, %v216
    %220 = vrot.lane.b32.xlu0 %v218, 8
    %v221 = vpop.permute.xlu0 %220
    %v223 = vadd.f32 %v213, %v221
    %v224 = vtanh.pop %v223
    %226 = vrot.lane.b32.xlu0 %v224, 16
    %v227 = vpop.permute.xlu0 %226
    %v229 = vmul.f32 %v207, %v227
    %231 = vset.pattern.permute.xlu0 24
    %232 = vperm.xlu0 %231, %v229
    %v233 = vpop.permute.xlu0 %232
    %v235 = vmul.f32 %v233, %v154
    %236 = vset.pattern.permute.xlu0 25
    %237 = vperm.xlu0 %236, %v229
    %v238 = vpop.permute.xlu0 %237
    %v240 = vmul.f32 %v238, %v158
    %241 = vset.pattern.permute.xlu0 26
    %242 = vperm.xlu0 %241, %v229
    %v243 = vpop.permute.xlu0 %242
    %v245 = vmul.f32 %v243, %v162
    %246 = vset.pattern.permute.xlu0 27
    %247 = vperm.xlu0 %246, %v229
    %v248 = vpop.permute.xlu0 %247
    %v250 = vmul.f32 %v248, %v166
    %251 = vset.pattern.permute.xlu0 28
    %252 = vperm.xlu0 %251, %v229
    %v253 = vpop.permute.xlu0 %252
    %v255 = vmul.f32 %v253, %v170
    %v257 = vrot.slane %v235, 6
    %v259 = vadd.f32 %v143, %v257
    %v260 = vadd.f32 %v240, %v245
    %v261 = vadd.f32 %v250, %v255
    %v263 = vrot.slane %v260, 6
    %v265 = vadd.f32 %v259, %v263
    %v267 = vrot.slane %v261, 6
    %v269 = vadd.f32 %v265, %v267
    %v270 = vmul.f32 %v269, 0.5
    %v271 = vtanh.pop %v270
    %v272 = vadd.f32 %v271, 1.0
    %v273 = vmul.f32 %v272, 0.5
    %v274 = vtanh.pop %v269
    %v276 = vrot.slane %v223, 6
    %v278 = vmul.f32 %v273, %v276
    %280 = vrot.lane.b32.xlu0 %v274, 112
    %v281 = vpop.permute.xlu0 %280
    %v283 = vmul.f32 %v273, %v281
    %285 = vrot.lane.b32.xlu0 %v283, 8
    %v286 = vpop.permute.xlu0 %285
    %v288 = vadd.f32 %v278, %v286
    %v289 = vtanh.pop %v288
    %291 = vrot.lane.b32.xlu0 %v289, 16
    %v292 = vpop.permute.xlu0 %291
    %v294 = vmul.f32 %v273, %v292
    %296 = vset.pattern.permute.xlu0 24
    %297 = vperm.xlu0 %296, %v294
    %v298 = vpop.permute.xlu0 %297
    %v300 = vmul.f32 %v298, %v154
    %301 = vset.pattern.permute.xlu0 25
    %302 = vperm.xlu0 %301, %v294
    %v303 = vpop.permute.xlu0 %302
    %v305 = vmul.f32 %v303, %v158
    %306 = vset.pattern.permute.xlu0 26
    %307 = vperm.xlu0 %306, %v294
    %v308 = vpop.permute.xlu0 %307
    %v310 = vmul.f32 %v308, %v162
    %311 = vset.pattern.permute.xlu0 27
    %312 = vperm.xlu0 %311, %v294
    %v313 = vpop.permute.xlu0 %312
    %v315 = vmul.f32 %v313, %v166
    %316 = vset.pattern.permute.xlu0 28
    %317 = vperm.xlu0 %316, %v294
    %v318 = vpop.permute.xlu0 %317
    %v320 = vmul.f32 %v318, %v170
    %v322 = vrot.slane %v300, 6
    %v324 = vadd.f32 %v143, %v322
    %v325 = vadd.f32 %v305, %v310
    %v326 = vadd.f32 %v315, %v320
    %v328 = vrot.slane %v325, 6
    %v330 = vadd.f32 %v324, %v328
    %v332 = vrot.slane %v326, 6
    %v334 = vadd.f32 %v330, %v332
    %v335 = vmul.f32 %v334, 0.5
    %v336 = vtanh.pop %v335
    %v337 = vadd.f32 %v336, 1.0
    %v338 = vmul.f32 %v337, 0.5
    %v339 = vtanh.pop %v334
    %v341 = vrot.slane %v288, 6
    %v343 = vmul.f32 %v338, %v341
    %345 = vrot.lane.b32.xlu0 %v339, 112
    %v346 = vpop.permute.xlu0 %345
    %v348 = vmul.f32 %v338, %v346
    %350 = vrot.lane.b32.xlu0 %v348, 8
    %v351 = vpop.permute.xlu0 %350
    %v353 = vadd.f32 %v343, %v351
    %v354 = vtanh.pop %v353
    %356 = vrot.lane.b32.xlu0 %v354, 16
    %v357 = vpop.permute.xlu0 %356
    %v359 = vmul.f32 %v338, %v357
    %361 = vset.pattern.permute.xlu0 24
    %362 = vperm.xlu0 %361, %v359
    %v363 = vpop.permute.xlu0 %362
    %v365 = vmul.f32 %v363, %v154
    %366 = vset.pattern.permute.xlu0 25
    %367 = vperm.xlu0 %366, %v359
    %v368 = vpop.permute.xlu0 %367
    %v370 = vmul.f32 %v368, %v158
    %371 = vset.pattern.permute.xlu0 26
    %372 = vperm.xlu0 %371, %v359
    %v373 = vpop.permute.xlu0 %372
    %v375 = vmul.f32 %v373, %v162
    %376 = vset.pattern.permute.xlu0 27
    %377 = vperm.xlu0 %376, %v359
    %v378 = vpop.permute.xlu0 %377
    %v380 = vmul.f32 %v378, %v166
    %381 = vset.pattern.permute.xlu0 28
    %382 = vperm.xlu0 %381, %v359
    %v383 = vpop.permute.xlu0 %382
    %v385 = vmul.f32 %v383, %v170
    %v387 = vrot.slane %v365, 6
    %v389 = vadd.f32 %v143, %v387
    %v390 = vadd.f32 %v370, %v375
    %v391 = vadd.f32 %v380, %v385
    %v393 = vrot.slane %v390, 6
    %v395 = vadd.f32 %v389, %v393
    %v397 = vrot.slane %v391, 6
    %v399 = vadd.f32 %v395, %v397
    %v400 = vmul.f32 %v399, 0.5
    %v401 = vtanh.pop %v400
    %v402 = vadd.f32 %v401, 1.0
    %v403 = vmul.f32 %v402, 0.5
    %v404 = vtanh.pop %v399
    %v406 = vrot.slane %v353, 6
    %v408 = vmul.f32 %v403, %v406
    %410 = vrot.lane.b32.xlu0 %v404, 112
    %v411 = vpop.permute.xlu0 %410
    %v413 = vmul.f32 %v403, %v411
    %415 = vrot.lane.b32.xlu0 %v413, 8
    %v416 = vpop.permute.xlu0 %415
    %v418 = vadd.f32 %v408, %v416
    %v419 = vtanh.pop %v418
    %421 = vrot.lane.b32.xlu0 %v419, 16
    %v422 = vpop.permute.xlu0 %421
    %v424 = vmul.f32 %v403, %v422
    %426 = vset.pattern.permute.xlu0 24
    %427 = vperm.xlu0 %426, %v424
    %v428 = vpop.permute.xlu0 %427
    %v430 = vmul.f32 %v428, %v154
    %431 = vset.pattern.permute.xlu0 25
    %432 = vperm.xlu0 %431, %v424
    %v433 = vpop.permute.xlu0 %432
    %v435 = vmul.f32 %v433, %v158
    %436 = vset.pattern.permute.xlu0 26
    %437 = vperm.xlu0 %436, %v424
    %v438 = vpop.permute.xlu0 %437
    %v440 = vmul.f32 %v438, %v162
    %441 = vset.pattern.permute.xlu0 27
    %442 = vperm.xlu0 %441, %v424
    %v443 = vpop.permute.xlu0 %442
    %v445 = vmul.f32 %v443, %v166
    %446 = vset.pattern.permute.xlu0 28
    %447 = vperm.xlu0 %446, %v424
    %v448 = vpop.permute.xlu0 %447
    %v450 = vmul.f32 %v448, %v170
    %v452 = vrot.slane %v430, 6
    %v454 = vadd.f32 %v148, %v452
    %v455 = vadd.f32 %v435, %v440
    %v456 = vadd.f32 %v445, %v450
    %v458 = vrot.slane %v455, 6
    %v460 = vadd.f32 %v454, %v458
    %v462 = vrot.slane %v456, 6
    %v464 = vadd.f32 %v460, %v462
    %v465 = vmul.f32 %v464, 0.5
    %v466 = vtanh.pop %v465
    %v467 = vadd.f32 %v466, 1.0
    %v468 = vmul.f32 %v467, 0.5
    %v469 = vtanh.pop %v464
    %v471 = vrot.slane %v418, 6
    %v473 = vmul.f32 %v468, %v471
    %475 = vrot.lane.b32.xlu0 %v469, 112
    %v476 = vpop.permute.xlu0 %475
    %v478 = vmul.f32 %v468, %v476
    %480 = vrot.lane.b32.xlu0 %v478, 8
    %v481 = vpop.permute.xlu0 %480
    %v483 = vadd.f32 %v473, %v481
    %v484 = vtanh.pop %v483
    %486 = vrot.lane.b32.xlu0 %v484, 16
    %v487 = vpop.permute.xlu0 %486
    %v489 = vmul.f32 %v468, %v487
    %491 = vset.pattern.permute.xlu0 24
    %492 = vperm.xlu0 %491, %v489
    %v493 = vpop.permute.xlu0 %492
    %v495 = vmul.f32 %v493, %v154
    %496 = vset.pattern.permute.xlu0 25
    %497 = vperm.xlu0 %496, %v489
    %v498 = vpop.permute.xlu0 %497
    %v500 = vmul.f32 %v498, %v158
    %501 = vset.pattern.permute.xlu0 26
    %502 = vperm.xlu0 %501, %v489
    %v503 = vpop.permute.xlu0 %502
    %v505 = vmul.f32 %v503, %v162
    %506 = vset.pattern.permute.xlu0 27
    %507 = vperm.xlu0 %506, %v489
    %v508 = vpop.permute.xlu0 %507
    %v510 = vmul.f32 %v508, %v166
    %511 = vset.pattern.permute.xlu0 28
    %512 = vperm.xlu0 %511, %v489
    %v513 = vpop.permute.xlu0 %512
    %v515 = vmul.f32 %v513, %v170
    %v517 = vrot.slane %v495, 6
    %v519 = vadd.f32 %v148, %v517
    %v520 = vadd.f32 %v500, %v505
    %v521 = vadd.f32 %v510, %v515
    %v523 = vrot.slane %v520, 6
    %v525 = vadd.f32 %v519, %v523
    %v527 = vrot.slane %v521, 6
    %v529 = vadd.f32 %v525, %v527
    %v530 = vmul.f32 %v529, 0.5
    %v531 = vtanh.pop %v530
    %v532 = vadd.f32 %v531, 1.0
    %v533 = vmul.f32 %v532, 0.5
    %v534 = vtanh.pop %v529
    %v536 = vrot.slane %v483, 6
    %v538 = vmul.f32 %v533, %v536
    %540 = vrot.lane.b32.xlu0 %v534, 112
    %v541 = vpop.permute.xlu0 %540
    %v543 = vmul.f32 %v533, %v541
    %545 = vrot.lane.b32.xlu0 %v543, 8
    %v546 = vpop.permute.xlu0 %545
    %v548 = vadd.f32 %v538, %v546
    %v549 = vtanh.pop %v548
    %551 = vrot.lane.b32.xlu0 %v549, 16
    %v552 = vpop.permute.xlu0 %551
    %v554 = vmul.f32 %v533, %v552
    %556 = vset.pattern.permute.xlu0 24
    %557 = vperm.xlu0 %556, %v554
    %v558 = vpop.permute.xlu0 %557
    %v560 = vmul.f32 %v558, %v154
    %561 = vset.pattern.permute.xlu0 25
    %562 = vperm.xlu0 %561, %v554
    %v563 = vpop.permute.xlu0 %562
    %v565 = vmul.f32 %v563, %v158
    %566 = vset.pattern.permute.xlu0 26
    %567 = vperm.xlu0 %566, %v554
    %v568 = vpop.permute.xlu0 %567
    %v570 = vmul.f32 %v568, %v162
    %571 = vset.pattern.permute.xlu0 27
    %572 = vperm.xlu0 %571, %v554
    %v573 = vpop.permute.xlu0 %572
    %v575 = vmul.f32 %v573, %v166
    %576 = vset.pattern.permute.xlu0 28
    %577 = vperm.xlu0 %576, %v554
    %v578 = vpop.permute.xlu0 %577
    %v580 = vmul.f32 %v578, %v170
    %v582 = vrot.slane %v560, 6
    %v584 = vadd.f32 %v148, %v582
    %v585 = vadd.f32 %v565, %v570
    %v586 = vadd.f32 %v575, %v580
    %v588 = vrot.slane %v585, 6
    %v590 = vadd.f32 %v584, %v588
    %v592 = vrot.slane %v586, 6
    %v594 = vadd.f32 %v590, %v592
    %v595 = vmul.f32 %v594, 0.5
    %v596 = vtanh.pop %v595
    %v597 = vadd.f32 %v596, 1.0
    %v598 = vmul.f32 %v597, 0.5
    %v599 = vtanh.pop %v594
    %v601 = vrot.slane %v548, 6
    %v603 = vmul.f32 %v598, %v601
    %605 = vrot.lane.b32.xlu0 %v599, 112
    %v606 = vpop.permute.xlu0 %605
    %v608 = vmul.f32 %v598, %v606
    %610 = vrot.lane.b32.xlu0 %v608, 8
    %v611 = vpop.permute.xlu0 %610
    %v613 = vadd.f32 %v603, %v611
    %v614 = vtanh.pop %v613
    %616 = vrot.lane.b32.xlu0 %v614, 16
    %v617 = vpop.permute.xlu0 %616
    %v619 = vmul.f32 %v598, %v617
    %621 = vset.pattern.permute.xlu0 24
    %622 = vperm.xlu0 %621, %v619
    %v623 = vpop.permute.xlu0 %622
    %v625 = vmul.f32 %v623, %v154
    %626 = vset.pattern.permute.xlu0 25
    %627 = vperm.xlu0 %626, %v619
    %v628 = vpop.permute.xlu0 %627
    %v630 = vmul.f32 %v628, %v158
    %631 = vset.pattern.permute.xlu0 26
    %632 = vperm.xlu0 %631, %v619
    %v633 = vpop.permute.xlu0 %632
    %v635 = vmul.f32 %v633, %v162
    %636 = vset.pattern.permute.xlu0 27
    %637 = vperm.xlu0 %636, %v619
    %v638 = vpop.permute.xlu0 %637
    %v640 = vmul.f32 %v638, %v166
    %641 = vset.pattern.permute.xlu0 28
    %642 = vperm.xlu0 %641, %v619
    %v643 = vpop.permute.xlu0 %642
    %v645 = vmul.f32 %v643, %v170
    %v647 = vrot.slane %v625, 6
    %v649 = vadd.f32 %v148, %v647
    %v650 = vadd.f32 %v630, %v635
    %v651 = vadd.f32 %v640, %v645
    %v653 = vrot.slane %v650, 6
    %v655 = vadd.f32 %v649, %v653
    %v657 = vrot.slane %v651, 6
    %v659 = vadd.f32 %v655, %v657
    %v660 = vmul.f32 %v659, 0.5
    %v661 = vtanh.pop %v660
    %v662 = vadd.f32 %v661, 1.0
    %v663 = vmul.f32 %v662, 0.5
    %v664 = vtanh.pop %v659
    %v666 = vrot.slane %v613, 6
    %v668 = vmul.f32 %v663, %v666
    %670 = vrot.lane.b32.xlu0 %v664, 112
    %v671 = vpop.permute.xlu0 %670
    %v673 = vmul.f32 %v663, %v671
    %675 = vrot.lane.b32.xlu0 %v673, 8
    %v676 = vpop.permute.xlu0 %675
    %v678 = vadd.f32 %v668, %v676
    %v679 = vtanh.pop %v678
    %681 = vrot.lane.b32.xlu0 %v679, 16
    %v682 = vpop.permute.xlu0 %681
    %v684 = vmul.f32 %v663, %v682
    %vm685 = vcmask 1041408
    %v686 = vsel %vm685, %v229, %v294
    %vm687 = vcmask 1043456
    %v688 = vsel %vm687, %v686, %v359
    %vm689 = vcmask 1045504
    %v690 = vsel %vm689, %v688, %v424
    %v691 = vsel %vm685, %v489, %v554
    %v692 = vsel %vm687, %v691, %v619
    %v693 = vsel %vm689, %v692, %v684
    %v694 = vld [vmem:[%s4] sm:$0xff]
    %v695 = vld [vmem:[%s5] sm:$0x1]
    %v697 = vlaneseq
    %v698 = vshrl.u32 %v697, 7
    %v699 = vsub.s32 0, %v698
    %v700 = vrot.slane %v695, %v699
    %704 = vrot.lane.b32.xlu0 %v690, 104
    %v705 = vpop.permute.xlu0 %704
    %706 = vrot.lane.b32.xlu0 %v693, 104
    %v707 = vpop.permute.xlu0 %706
    %vm708 = vcmask 64512
    %v709 = vsel %vm708, %v705, 0
    %v711 = vsel %vm708, %v707, 0
    %713 = vmatprep.subr.mxu0 0.0
    %714 = vmatpush1.msra.mxu0 %v694
    %715 = vmatprep.subr.mxu0 0.0
    %716 = vmatpush1.msra.mxu0 0.0
    %717 = vmatprep.subr.mxu0 0.0
    %718 = vmatpush1.msra.mxu0 0.0
    %719 = vmatprep.subr.mxu0 0.0
    %720 = vmatpush1.msra.mxu0 0.0
    %721 = vmatprep.subr.mxu0 0.0
    %722 = vmatpush1.msra.mxu0 0.0
    %723 = vmatprep.subr.mxu0 0.0
    %724 = vmatpush1.msra.mxu0 0.0
    %725 = vmatprep.subr.mxu0 0.0
    %726 = vmatpush1.msra.mxu0 0.0
    %727 = vmatprep.subr.mxu0 0.0
    %728 = vmatpush1.msra.mxu0 0.0
    %729 = vmatprep.subr.mxu0 0.0
    %730 = vmatpush1.msra.mxu0 0.0
    %731 = vmatprep.subr.mxu0 0.0
    %732 = vmatpush1.msra.mxu0 0.0
    %733 = vmatprep.subr.mxu0 0.0
    %734 = vmatpush1.msra.mxu0 0.0
    %735 = vmatprep.subr.mxu0 0.0
    %736 = vmatpush1.msra.mxu0 0.0
    %737 = vmatprep.subr.mxu0 0.0
    %738 = vmatpush1.msra.mxu0 0.0
    %739 = vmatprep.subr.mxu0 0.0
    %740 = vmatpush1.msra.mxu0 0.0
    %741 = vmatprep.subr.mxu0 0.0
    %742 = vmatpush1.msra.mxu0 0.0
    %743 = vmatprep.subr.mxu0 0.0
    %744 = vmatpush1.msra.mxu0 0.0
    %745 = vmatprep.subr.mxu0 0.0
    %746 = vmatpush1.msra.mxu0 0.0
    %747 = vmatprep.subr.mxu0 0.0
    %748 = vmatpush1.msra.mxu0 0.0
    %749 = vmatprep.subr.mxu0 0.0
    %750 = vmatpush1.msra.mxu0 0.0
    %751 = vmatprep.subr.mxu0 0.0
    %752 = vmatpush1.msra.mxu0 0.0
    %753 = vmatprep.subr.mxu0 0.0
    %754 = vmatpush1.msra.mxu0 0.0
    %755 = vmatprep.subr.mxu0 0.0
    %756 = vmatpush1.msra.mxu0 0.0
    %757 = vmatprep.subr.mxu0 0.0
    %758 = vmatpush1.msra.mxu0 0.0
    %759 = vmatprep.subr.mxu0 0.0
    %760 = vmatpush1.msra.mxu0 0.0
    %761 = vmatprep.subr.mxu0 0.0
    %762 = vmatpush1.msra.mxu0 0.0
    %763 = vmatprep.subr.mxu0 0.0
    %764 = vmatpush1.msra.mxu0 0.0
    %765 = vmatprep.subr.mxu0 0.0
    %766 = vmatpush1.msra.mxu0 0.0
    %767 = vmatprep.subr.mxu0 0.0
    %768 = vmatpush1.msra.mxu0 0.0
    %769 = vmatprep.subr.mxu0 0.0
    %770 = vmatpush1.msra.mxu0 0.0
    %771 = vmatprep.subr.mxu0 0.0
    %772 = vmatpush1.msra.mxu0 0.0
    %773 = vmatprep.subr.mxu0 0.0
    %774 = vmatpush1.msra.mxu0 0.0
    %775 = vmatprep.subr.mxu0 0.0
    %776 = vmatpush1.msra.mxu0 0.0
    %777 = vmatprep.mubr.f32.mxu0 0.0
    %778 = vmatmul.mubr.f32.gmra.mrb[0].mxu0 %v709
    %v779 = vpop.f32.mrb[0].mxu0
    %v780 = vadd.f32 %v700, %v779
    %v781 = vpop.f32.mrb[0].mxu0
    %782 = vmatprep.mubr.f32.mxu0 0.0
    %783 = vmatmul.mubr.f32.gmra.mrb[0].mxu0 %v711
    %v784 = vpop.f32.mrb[0].mxu0
    %v785 = vadd.f32 %v700, %v784
    %v786 = vpop.f32.mrb[0].mxu0
    %787 = vdwg.mxu0
    %vm788 = vcmask 31744
    %789 = vst.msk [vmem:[%s8] sm:$0xff] %vm788, %v780
    %790 = vst.msk [vmem:[%s8 + $0x8] sm:$0xff] %vm788, %v785
    // Predicated region
    $region42: #{tpu_custom_call.1} parent=1 // pred_check
      _
    $region43: #{tpu_custom_call.1} parent=1 // pred_check_branch
      %792 = sbr.rel (0) target = $region45
    $region44: #{tpu_custom_call.1} parent=1 // pred_region
      _
    $region45: #{tpu_custom_call.1} parent=1 // pred_fallthru
      _
    // Predicated region
    $region46: #{tpu_custom_call.1} parent=1 // pred_check
      _
    $region47: #{tpu_custom_call.1} parent=1 // pred_check_branch
      %794 = sbr.rel (0) target = $region49
    $region48: #{tpu_custom_call.1} parent=1 // pred_region
      _
    $region49: #{tpu_custom_call.1} parent=1 // pred_fallthru
      _
    %795 = vsyncpa [#allocation3], 1
    %796 = vsyncpa [#allocation5], 1

</llo_original>
